<compile_context>
chip_gen: v7x
topology: tpu7x:2x2x1
jax: 0.10.0
libtpu: 0.0.40
codegen_flags: <defaults>
</compile_context>

<pallas_src>
import jax
import jax.numpy as jnp
from jax.experimental import pallas as pl
from jax.experimental.pallas import tpu as pltpu


def _netd_kernel(w_ref, b_ref, x_ref, o_ref):
    # w_ref: SMEM (2,) f32; b_ref: SMEM (1,) f32
    # x_ref: VMEM (2, block_rows, lanes) f32 -- stacked feature slabs
    # o_ref: VMEM (block_rows, lanes) f32    -- lane-dense output
    w0 = w_ref[0]
    w1 = w_ref[1]
    b = b_ref[0]
    # y = w0*x0 + w1*x1 + b  -- scalar broadcasts, pure VPU, lane-dense store.
    o_ref[...] = x_ref[0] * w0 + x_ref[1] * w1 + b


def _round_up(a, b):
    return ((a + b - 1) // b) * b


def netd_forward(x, weight, bias, *, lanes=1024, block_rows=512,
                 min_pallas_batch=4096):
    """Pallas TPU implementation of NetD.forward: y = x @ W^T + b.

    x:      (N, 2) float32
    weight: (1, 2) float32  (PyTorch Linear layout: (out, in))
    bias:   (1,)   float32
    returns (N, 1) float32
    """
    n = x.shape[0]
    x = x.astype(jnp.float32)
    w = weight.reshape(2).astype(jnp.float32)
    b = bias.reshape(1).astype(jnp.float32)

    # Tiny-batch fast path: one fused XLA elementwise op, no padding/dispatch.
    if n < min_pallas_batch:
        return (x[:, 0] * w[0] + x[:, 1] * w[1] + b[0])[:, None]

    # --- tiling ----------------------------------------------------------
    rows = pl.cdiv(n, lanes)
    rows8 = _round_up(rows, 8)
    # Keep the 1-D "parallel" grid at >= ~4 steps on mid-size batches (so both
    # v7x TensorCores get work) while capping blocks at ~2 MiB/slab for large
    # batches: 2 MiB input-slab-pair x2 bufs + 2 MiB out x2 bufs = 12 MiB VMEM,
    # inside the 16 MiB v5e scoped default (and well inside v6e/v7x).
    adaptive = _round_up(max(pl.cdiv(rows8, 4), 64), 8)
    block_rows = max(8, min(block_rows, adaptive, rows8))
    rows_pad = _round_up(rows8, block_rows)
    n_pad = rows_pad * lanes
    grid = (rows_pad // block_rows,)

    # Pad + stack the two features into one (2, rows_pad, lanes) slab.  Under
    # jit the pad/transpose/reshape fuse into a single pass feeding the kernel,
    # and the single stacked input means one DMA descriptor per grid step.
    x_pad = jnp.pad(x, ((0, n_pad - n), (0, 0)))
    xs = x_pad.T.reshape(2, rows_pad, lanes)

    y2d = pl.pallas_call(
        _netd_kernel,
        out_shape=jax.ShapeDtypeStruct((rows_pad, lanes), jnp.float32),
        grid=grid,
        in_specs=[
            pl.BlockSpec(memory_space=pltpu.SMEM),   # weight (2,) scalars
            pl.BlockSpec(memory_space=pltpu.SMEM),   # bias   (1,) scalar
            pl.BlockSpec((2, block_rows, lanes), lambda i: (0, i, 0)),
        ],
        out_specs=pl.BlockSpec((block_rows, lanes), lambda i: (i, 0)),
        compiler_params=pltpu.CompilerParams(
            dimension_semantics=("parallel",),
        ),
        cost_estimate=pl.CostEstimate(
            flops=4 * rows_pad * lanes,              # 2 mul + 2 add per output
            transcendentals=0,
            bytes_accessed=12 * rows_pad * lanes,    # 8 B in + 4 B out / elem
        ),
    )(w, b, xs)

    # Back to the PyTorch output layout (N, 1).
    return y2d.reshape(n_pad, 1)[:n]


# Jitted entry point: guarantees the wrapper's pad / stack / slice ops fuse
# around the pallas_call instead of running as separate dispatches.
netd_forward_jit = jax.jit(
    netd_forward,
    static_argnames=("lanes", "block_rows", "min_pallas_batch"),
)


if __name__ == "__main__":
    # Deterministic parameters exactly as in NetD.weight_init()
    weight = jnp.array([[1.0, 2.0]], dtype=jnp.float32)  # (out=1, in=2)
    bias = jnp.array([-1.0], dtype=jnp.float32)          # (1,)

    key = jax.random.PRNGKey(0)

    # 1) Small batch forced through the Pallas kernel path.
    x = jax.random.normal(key, (8, 2), dtype=jnp.float32)
    y = jax.block_until_ready(
        netd_forward_jit(x, weight, bias, min_pallas_batch=0))
    y_ref = x @ weight.T + bias
    assert y.shape == (8, 1)
    assert jnp.allclose(y, y_ref, atol=1e-6), (y, y_ref)

    # 2) Non-tile-aligned batch through the Pallas kernel (padding + slicing).
    x2 = jax.random.normal(jax.random.PRNGKey(0), (300, 2), dtype=jnp.float32)
    y2 = jax.block_until_ready(
        netd_forward_jit(x2, weight, bias, min_pallas_batch=0))
    assert y2.shape == (300, 1)
    assert jnp.allclose(y2, x2 @ weight.T + bias, atol=1e-6)

    # 3) Larger batch through the default dispatch (Pallas path).
    x3 = jax.random.normal(jax.random.PRNGKey(1), (40000, 2), dtype=jnp.float32)
    y3 = jax.block_until_ready(netd_forward_jit(x3, weight, bias))
    assert y3.shape == (40000, 1)
    assert jnp.allclose(y3, x3 @ weight.T + bias, atol=1e-5)

    # 4) Tiny-batch fast path (pure fused XLA elementwise).
    y4 = jax.block_until_ready(netd_forward_jit(x, weight, bias))
    assert y4.shape == (8, 1)
    assert jnp.allclose(y4, y_ref, atol=1e-6)

    print("KERNEL_OK")
</pallas_src>

<mosaic_0001>
module attributes {stable_mosaic.version = 11 : i64} {
  func.func @_netd_kernel(%arg0: i32, %arg1: memref<2xf32, #tpu.memory_space<smem>>, %arg2: memref<1xf32, #tpu.memory_space<smem>>, %arg3: memref<2x8x1024xf32, #tpu.memory_space<vmem>>, %arg4: memref<8x1024xf32, #tpu.memory_space<vmem>>) attributes {dimension_semantics = [#tpu.dimension_semantics<parallel>], iteration_bounds = array<i64: 1>, scalar_prefetch = 0 : i64, scratch_operands = 0 : i64, tpu.core_type = #tpu.core_type<tc>, window_params = [{transform_indices = @transform_0, window_bounds = array<i64: 2>}, {transform_indices = @transform_1, window_bounds = array<i64: 1>}, {transform_indices = @transform_2, window_bounds = array<i64: 2, 8, 1024>}, {transform_indices = @transform_3, window_bounds = array<i64: 8, 1024>}]} {
    %c0 = arith.constant 0 : index
    %0 = memref.load %arg1[%c0] : memref<2xf32, #tpu.memory_space<smem>>
    %c1 = arith.constant 1 : index
    %1 = memref.load %arg1[%c1] : memref<2xf32, #tpu.memory_space<smem>>
    %c0_0 = arith.constant 0 : index
    %2 = memref.load %arg2[%c0_0] : memref<1xf32, #tpu.memory_space<smem>>
    %c0_1 = arith.constant 0 : index
    %c0_2 = arith.constant 0 : index
    %c0_3 = arith.constant 0 : index
    %3 = vector.load %arg3[%c0_1, %c0_2, %c0_3] : memref<2x8x1024xf32, #tpu.memory_space<vmem>>, vector<1x8x1024xf32>
    %4 = vector.shape_cast %3 : vector<1x8x1024xf32> to vector<8x1024xf32>
    %5 = vector.broadcast %0 : f32 to vector<8x1024xf32>
    %6 = arith.mulf %4, %5 : vector<8x1024xf32>
    %c1_4 = arith.constant 1 : index
    %c0_5 = arith.constant 0 : index
    %c0_6 = arith.constant 0 : index
    %7 = vector.load %arg3[%c1_4, %c0_5, %c0_6] : memref<2x8x1024xf32, #tpu.memory_space<vmem>>, vector<1x8x1024xf32>
    %8 = vector.shape_cast %7 : vector<1x8x1024xf32> to vector<8x1024xf32>
    %9 = vector.broadcast %1 : f32 to vector<8x1024xf32>
    %10 = arith.mulf %8, %9 : vector<8x1024xf32>
    %11 = arith.addf %6, %10 : vector<8x1024xf32>
    %12 = vector.broadcast %2 : f32 to vector<8x1024xf32>
    %13 = arith.addf %11, %12 : vector<8x1024xf32>
    %c0_7 = arith.constant 0 : index
    %c0_8 = arith.constant 0 : index
    %14 = vector.load %arg4[%c0_7, %c0_8] : memref<8x1024xf32, #tpu.memory_space<vmem>>, vector<8x1024xf32>
    tpu.vector_store %arg4[%c0_7, %c0_8], %13 {strides = array<i32>} : memref<8x1024xf32, #tpu.memory_space<vmem>>, vector<8x1024xf32>,
    return
  }
  func.func @transform_0(%arg0: i32) -> i32 {
    %c0_i32 = arith.constant 0 : i32
    %c0_i32_0 = arith.constant 0 : i32
    return %c0_i32 : i32
  }
  func.func @transform_1(%arg0: i32) -> i32 {
    %c0_i32 = arith.constant 0 : i32
    %c0_i32_0 = arith.constant 0 : i32
    return %c0_i32 : i32
  }
  func.func @transform_2(%arg0: i32) -> (i32, i32, i32) {
    %c0_i32 = arith.constant 0 : i32
    %c0_i32_0 = arith.constant 0 : i32
    %c0_i32_1 = arith.constant 0 : i32
    return %c0_i32, %arg0, %c0_i32_0 : i32, i32, i32
  }
  func.func @transform_3(%arg0: i32) -> (i32, i32) {
    %c0_i32 = arith.constant 0 : i32
    %c0_i32_0 = arith.constant 0 : i32
    return %arg0, %c0_i32 : i32, i32
  }
}

</mosaic_0001>

<llo_original>
// kernel: netd_forward.1
$region0: #{netd_forward.1}
  #allocation0 [shape = 'u32[]', space=smem, size = 0x4, offset = 0x4, fixed_abs, tag = 'smem constant byte address 0x4 - core index']
  #allocation1 [shape = 'u32[144,128]{1,0:T(1,128)}', space=vmem, size = 0x12000, scoped, tag = 'internal scratch']
  #allocation2 [shape = 'f32[1]{0:T(128)S(6)}', space=smem, size = 0x200, scoped, tag = 'scoped memory for netd_forward.1']
  %s0 = inlined_call_operand.vmem [shape: f32[2], index: 0, kind: input, shape index: {}]
  %s1 = inlined_call_operand.<no memory space> [shape: f32[1], index: 1, kind: input, shape index: {}]
  %s2 = inlined_call_operand.vmem [shape: f32[2,8,1024], index: 2, kind: input, shape index: {}]
  %s3 = inlined_call_operand.vmem [shape: f32[8,1024], index: 3, kind: output, shape index: {}]
  %s4 = sld [smem:[#allocation0]]
  $region26: #{netd_forward.1} parent=0
    _
  %s6 = ssub.s32 1, %s4
  %s7 = scalar_select 0, %s6, %s4
  %8 = sst [smem:[#allocation2]] %s1
  $region1: #{netd_forward.1} parent=0
    #allocation3 [shape = 'u8[512]{0}', space=smem, size = 0x200, scoped, tag = 'input window, operand 0, single buffered']
    #allocation4 [shape = 's32[1]{0}', space=sflag, size = 0x4, scoped, tag = 'scoped memory for netd_forward.1']
    %9 = vsyncpa [#allocation4], 0
    // Predicated region
    $region2: #{netd_forward.1} parent=1 // pred_check
      _
    $region3: #{netd_forward.1} parent=1 // pred_check_branch
      %11 = sbr.rel (0) target = $region5
    $region4: #{netd_forward.1} parent=1 // pred_region
      %s13 = ssub.s32 16, 16
      %14 = vsyncadd [#allocation4], %s13
      %s16 = sshll.u32 %s0, 4
      %s17 = int_to_ptr.vmem [resolvable:$true] %s16
      %19 = dma.vmem_to_smem %s17, 16, [#allocation3], [#allocation4]
    $region5: #{netd_forward.1} parent=1 // pred_fallthru
      _
    // Predicated region
    $region6: #{netd_forward.1} parent=1 // pred_check
      _
    $region7: #{netd_forward.1} parent=1 // pred_check_branch
      %21 = sbr.rel (0) target = $region9
    $region8: #{netd_forward.1} parent=1 // pred_region
      _
    $region9: #{netd_forward.1} parent=1 // pred_fallthru
      _
    // Predicated region
    $region10: #{netd_forward.1} parent=1 // pred_check
      _
    $region11: #{netd_forward.1} parent=1 // pred_check_branch
      %23 = sbr.rel (0) target = $region13
    $region12: #{netd_forward.1} parent=1 // pred_region
      _
    $region13: #{netd_forward.1} parent=1 // pred_fallthru
      _
    // Predicated region
    $region14: #{netd_forward.1} parent=1 // pred_check
      _
    $region15: #{netd_forward.1} parent=1 // pred_check_branch
      %25 = sbr.rel (0) target = $region17
    $region16: #{netd_forward.1} parent=1 // pred_region
      %26 = dma.done [#allocation4], 16
    $region17: #{netd_forward.1} parent=1 // pred_fallthru
      _
    %27 = sfence
    %s28 = sld [smem:[#allocation3]]
    %s29 = sld [smem:[#allocation3 + $0x1]]
    %s30 = sld [smem:[#allocation2]]
    %v31 = vld [vmem:[%s2] sm:$0xff]
    %v32 = vld [vmem:[%s2 + $0x8] sm:$0xff]
    %v33 = vld [vmem:[%s2 + $0x10] sm:$0xff]
    %v34 = vld [vmem:[%s2 + $0x18] sm:$0xff]
    %v35 = vld [vmem:[%s2 + $0x20] sm:$0xff]
    %v36 = vld [vmem:[%s2 + $0x28] sm:$0xff]
    %v37 = vld [vmem:[%s2 + $0x30] sm:$0xff]
    %v38 = vld [vmem:[%s2 + $0x38] sm:$0xff]
    %v39 = vstv %s28
    %v40 = vmul.f32 %v31, %v39
    %v41 = vmul.f32 %v32, %v39
    %v42 = vmul.f32 %v33, %v39
    %v43 = vmul.f32 %v34, %v39
    %v44 = vmul.f32 %v35, %v39
    %v45 = vmul.f32 %v36, %v39
    %v46 = vmul.f32 %v37, %v39
    %v47 = vmul.f32 %v38, %v39
    %s48 = scalar_lea.vmem %s2, 64
    %v49 = vld [vmem:[%s48] sm:$0xff]
    %v50 = vld [vmem:[%s48 + $0x8] sm:$0xff]
    %v51 = vld [vmem:[%s48 + $0x10] sm:$0xff]
    %v52 = vld [vmem:[%s48 + $0x18] sm:$0xff]
    %v53 = vld [vmem:[%s48 + $0x20] sm:$0xff]
    %v54 = vld [vmem:[%s48 + $0x28] sm:$0xff]
    %v55 = vld [vmem:[%s48 + $0x30] sm:$0xff]
    %v56 = vld [vmem:[%s48 + $0x38] sm:$0xff]
    %v57 = vstv %s29
    %v58 = vmul.f32 %v49, %v57
    %v59 = vmul.f32 %v50, %v57
    %v60 = vmul.f32 %v51, %v57
    %v61 = vmul.f32 %v52, %v57
    %v62 = vmul.f32 %v53, %v57
    %v63 = vmul.f32 %v54, %v57
    %v64 = vmul.f32 %v55, %v57
    %v65 = vmul.f32 %v56, %v57
    %v66 = vadd.f32 %v40, %v58
    %v67 = vadd.f32 %v41, %v59
    %v68 = vadd.f32 %v42, %v60
    %v69 = vadd.f32 %v43, %v61
    %v70 = vadd.f32 %v44, %v62
    %v71 = vadd.f32 %v45, %v63
    %v72 = vadd.f32 %v46, %v64
    %v73 = vadd.f32 %v47, %v65
    %v74 = vstv %s30
    %v75 = vadd.f32 %v66, %v74
    %v76 = vadd.f32 %v67, %v74
    %v77 = vadd.f32 %v68, %v74
    %v78 = vadd.f32 %v69, %v74
    %v79 = vadd.f32 %v70, %v74
    %v80 = vadd.f32 %v71, %v74
    %v81 = vadd.f32 %v72, %v74
    %v82 = vadd.f32 %v73, %v74
    %83 = vst [vmem:[%s3] sm:$0xff] %v75
    %84 = vst [vmem:[%s3 + $0x8] sm:$0xff] %v76
    %85 = vst [vmem:[%s3 + $0x10] sm:$0xff] %v77
    %86 = vst [vmem:[%s3 + $0x18] sm:$0xff] %v78
    %87 = vst [vmem:[%s3 + $0x20] sm:$0xff] %v79
    %88 = vst [vmem:[%s3 + $0x28] sm:$0xff] %v80
    %89 = vst [vmem:[%s3 + $0x30] sm:$0xff] %v81
    %90 = vst [vmem:[%s3 + $0x38] sm:$0xff] %v82
    // Predicated region
    $region18: #{netd_forward.1} parent=1 // pred_check
      _
    $region19: #{netd_forward.1} parent=1 // pred_check_branch
      %92 = sbr.rel (0) target = $region21
    $region20: #{netd_forward.1} parent=1 // pred_region
      _
    $region21: #{netd_forward.1} parent=1 // pred_fallthru
      _
    // Predicated region
    $region22: #{netd_forward.1} parent=1 // pred_check
      _
    $region23: #{netd_forward.1} parent=1 // pred_check_branch
      %94 = sbr.rel (0) target = $region25
    $region24: #{netd_forward.1} parent=1 // pred_region
      _
    $region25: #{netd_forward.1} parent=1 // pred_fallthru
      _
    %95 = vsyncpa [#allocation4], 1

</llo_original>
